<compile_context>
chip_gen: v7x
topology: tpu7x:2x2x1
jax: 0.10.0
libtpu: 0.0.40
codegen_flags: <defaults>
</compile_context>

<pallas_src>
import jax
import jax.numpy as jnp
from jax import lax
from jax.experimental import pallas as pl
from jax.experimental.pallas import tpu as pltpu

_LANES = 128
_TARGET_BLOCK_BYTES = 2 * 1024 * 1024  # ~2 MiB per-array tile: safe on all of v5e/v6e/v7x


def _bitwise_and_kernel(x_ref, y_ref, o_ref):
    # Hot path: one VPU bitwise-AND per vreg; kernel is 100% HBM-bandwidth bound.
    o_ref[...] = jnp.bitwise_and(x_ref[...], y_ref[...])


def _run_2d(xf, x2f, rows):
    """Launch the tiled kernel on (rows, 128) lane-dense slabs."""
    dtype = xf.dtype
    itemsize = dtype.itemsize
    # Minimum sublane granularity scales with element width (8 for 32-bit,
    # 16 for 16-bit, 32 for 8-bit) because sub-32-bit dtypes pack along sublanes.
    sublane = 8 * (4 // itemsize) if itemsize < 4 else 8

    # Row-tile size targeting ~2 MiB per array per block.
    tr_cap = max(sublane, _TARGET_BLOCK_BYTES // (_LANES * itemsize))
    tr_cap = (tr_cap // sublane) * sublane
    if rows <= tr_cap:
        tr = rows  # single block == full array dims (always a legal block shape)
    else:
        tr = tr_cap  # multiple of sublane; ragged last block is masked by Pallas

    grid = (pl.cdiv(rows, tr),)
    return pl.pallas_call(
        _bitwise_and_kernel,
        out_shape=jax.ShapeDtypeStruct((rows, _LANES), dtype),
        grid=grid,
        in_specs=[
            pl.BlockSpec((tr, _LANES), lambda i: (i, 0)),
            pl.BlockSpec((tr, _LANES), lambda i: (i, 0)),
        ],
        out_specs=pl.BlockSpec((tr, _LANES), lambda i: (i, 0)),
        compiler_params=pltpu.CompilerParams(
            # Shard the row-tile axis across v7x's 2 TensorCores; serial (and
            # harmless) on single-TC v5e/v6e.
            dimension_semantics=("parallel",),
        ),
        # TODO(synk): if the caller can donate `x`, add input_output_aliases={0: 0}
        # to cut HBM traffic from 3 streams to 2 on this purely mem-bound kernel.
    )(xf, x2f)


def bitwise_and(x, x2):
    """Pallas TPU implementation of torch.bitwise_and(x, x2) for integer/bool tensors."""
    assert x.shape == x2.shape and x.dtype == x2.dtype
    orig_shape = x.shape
    orig_dtype = x.dtype
    n = x.size
    if n == 0:
        return jnp.bitwise_and(x, x2)

    # bool packs awkwardly into TPU vregs; widen to uint8 for the kernel.
    is_bool = orig_dtype == jnp.bool_
    x_work = x.astype(jnp.uint8) if is_bool else x
    x2_work = x2.astype(jnp.uint8) if is_bool else x2

    itemsize = x_work.dtype.itemsize
    xf = x_work.reshape(-1)
    x2f = x2_work.reshape(-1)

    packed = False
    if itemsize < 4 and (n * itemsize) % 4 == 0:
        # Pack 4-byte groups of sub-32-bit elements into uint32 words: bitwise
        # AND is byte-wise, so AND on packed words is identical and quarters the
        # vreg / store count while keeping the standard (8, 128) tiling.
        k = 4 // itemsize
        xf = lax.bitcast_convert_type(xf.reshape(-1, k), jnp.uint32)
        x2f = lax.bitcast_convert_type(x2f.reshape(-1, k), jnp.uint32)
        packed = True

    m = xf.size
    if m % _LANES == 0:
        # Fast path: pure metadata reshape — no pad, no output slice.
        rows = m // _LANES
        out = _run_2d(xf.reshape(rows, _LANES), x2f.reshape(rows, _LANES), rows)
        out = out.reshape(-1)
    else:
        # General path: pad only up to the next lane multiple.
        pad = _LANES - (m % _LANES)
        rows = (m + pad) // _LANES
        out = _run_2d(
            jnp.pad(xf, (0, pad)).reshape(rows, _LANES),
            jnp.pad(x2f, (0, pad)).reshape(rows, _LANES),
            rows,
        )
        out = out.reshape(-1)[:m]

    if packed:
        out = lax.bitcast_convert_type(out, x_work.dtype).reshape(-1)[:n]
    if is_bool:
        out = out.astype(jnp.bool_)
    return out.reshape(orig_shape)


if __name__ == "__main__":
    key = jax.random.PRNGKey(0)
    k1, k2 = jax.random.split(key)
    shape = (2, 4, 16, 16)
    x = jax.random.randint(k1, shape, minval=-1000, maxval=1000, dtype=jnp.int32)
    x2 = jax.random.randint(k2, shape, minval=-1000, maxval=1000, dtype=jnp.int32)

    result = bitwise_and(x, x2)
    jax.block_until_ready(result)

    expected = jnp.bitwise_and(x, x2)
    assert result.shape == expected.shape
    assert result.dtype == expected.dtype
    assert bool(jnp.all(result == expected))
    print("KERNEL_OK")
</pallas_src>

<mosaic_0001>
module attributes {stable_mosaic.version = 11 : i64} {
  func.func @_bitwise_and_kernel(%arg0: i32, %arg1: memref<16x128xi32, #tpu.memory_space<vmem>>, %arg2: memref<16x128xi32, #tpu.memory_space<vmem>>, %arg3: memref<16x128xi32, #tpu.memory_space<vmem>>) attributes {dimension_semantics = [#tpu.dimension_semantics<parallel>], iteration_bounds = array<i64: 1>, scalar_prefetch = 0 : i64, scratch_operands = 0 : i64, tpu.core_type = #tpu.core_type<tc>, window_params = [{transform_indices = @transform_0, window_bounds = array<i64: 16, 128>}, {transform_indices = @transform_1, window_bounds = array<i64: 16, 128>}, {transform_indices = @transform_2, window_bounds = array<i64: 16, 128>}]} {
    %c0 = arith.constant 0 : index
    %c0_0 = arith.constant 0 : index
    %0 = vector.load %arg1[%c0, %c0_0] : memref<16x128xi32, #tpu.memory_space<vmem>>, vector<16x128xi32>
    %c0_1 = arith.constant 0 : index
    %c0_2 = arith.constant 0 : index
    %1 = vector.load %arg2[%c0_1, %c0_2] : memref<16x128xi32, #tpu.memory_space<vmem>>, vector<16x128xi32>
    %2 = arith.andi %0, %1 : vector<16x128xi32>
    %c0_3 = arith.constant 0 : index
    %c0_4 = arith.constant 0 : index
    %3 = vector.load %arg3[%c0_3, %c0_4] : memref<16x128xi32, #tpu.memory_space<vmem>>, vector<16x128xi32>
    tpu.vector_store %arg3[%c0_3, %c0_4], %2 {strides = array<i32>} : memref<16x128xi32, #tpu.memory_space<vmem>>, vector<16x128xi32>,
    return
  }
  func.func @transform_0(%arg0: i32) -> (i32, i32) {
    %c0_i32 = arith.constant 0 : i32
    %c0_i32_0 = arith.constant 0 : i32
    return %arg0, %c0_i32 : i32, i32
  }
  func.func @transform_1(%arg0: i32) -> (i32, i32) {
    %c0_i32 = arith.constant 0 : i32
    %c0_i32_0 = arith.constant 0 : i32
    return %arg0, %c0_i32 : i32, i32
  }
  func.func @transform_2(%arg0: i32) -> (i32, i32) {
    %c0_i32 = arith.constant 0 : i32
    %c0_i32_0 = arith.constant 0 : i32
    return %arg0, %c0_i32 : i32, i32
  }
}

</mosaic_0001>

<llo_original>
// kernel: tpu_custom_call.1
$region0: #{tpu_custom_call.1}
  #allocation0 [shape = 'u32[]', space=smem, size = 0x4, offset = 0x4, fixed_abs, tag = 'smem constant byte address 0x4 - core index']
  #allocation1 [shape = 'u32[144,128]{1,0:T(1,128)}', space=vmem, size = 0x12000, scoped, tag = 'internal scratch']
  %s0 = inlined_call_operand.hbm [shape: s32[16,128], index: 0, kind: input, shape index: {}]
  %s1 = inlined_call_operand.hbm [shape: s32[16,128], index: 1, kind: input, shape index: {}]
  %s2 = inlined_call_operand.hbm [shape: s32[16,128], index: 2, kind: output, shape index: {}]
  %s3 = sld [smem:[#allocation0]]
  $region26: #{tpu_custom_call.1} parent=0
    _
  %s5 = ssub.s32 1, %s3
  %s6 = scalar_select 0, %s5, %s3
  $region1: #{tpu_custom_call.1} parent=0
    #allocation2 [shape = 'u8[8192]{0}', space=vmem, size = 0x2000, scoped, tag = 'input window, operand 0, single buffered']
    #allocation3 [shape = 's32[1]{0}', space=sflag, size = 0x4, scoped, tag = 'scoped memory for tpu_custom_call.1']
    #allocation4 [shape = 's32[1]{0}', space=sflag, size = 0x4, scoped, tag = 'scoped memory for tpu_custom_call.1']
    #allocation5 [shape = 'u8[8192]{0}', space=vmem, size = 0x2000, scoped, tag = 'input window, operand 1, single buffered']
    #allocation6 [shape = 's32[1]{0}', space=sflag, size = 0x4, scoped, tag = 'scoped memory for tpu_custom_call.1']
    #allocation7 [shape = 'u8[8192]{0}', space=vmem, size = 0x2000, scoped, tag = 'output window, operand 0, single buffered']
    %7 = vsyncpa [#allocation3], 0
    %8 = vsyncpa [#allocation6], 0
    %9 = vsyncpa [#allocation4], 0
    // Predicated region
    $region2: #{tpu_custom_call.1} parent=1 // pred_check
      _
    $region3: #{tpu_custom_call.1} parent=1 // pred_check_branch
      %11 = sbr.rel (0) target = $region5
    $region4: #{tpu_custom_call.1} parent=1 // pred_region
      %s13 = ssub.s32 256, 256
      %14 = vsyncadd [#allocation3], %s13
      %s15 = sshll.u32 [#allocation2], 4
      %s16 = int_to_ptr.vmem [resolvable:$true] %s15
      %21 = dma.hbm_to_vmem [thread:$0]  %s0, 256, %s16, [#allocation3], 128, 128, 8
    $region5: #{tpu_custom_call.1} parent=1 // pred_fallthru
      _
    // Predicated region
    $region6: #{tpu_custom_call.1} parent=1 // pred_check
      _
    $region7: #{tpu_custom_call.1} parent=1 // pred_check_branch
      %23 = sbr.rel (0) target = $region9
    $region8: #{tpu_custom_call.1} parent=1 // pred_region
      %s25 = ssub.s32 256, 256
      %26 = vsyncadd [#allocation6], %s25
      %s27 = sshll.u32 [#allocation5], 4
      %s28 = int_to_ptr.vmem [resolvable:$true] %s27
      %33 = dma.hbm_to_vmem [thread:$0]  %s1, 256, %s28, [#allocation6], 128, 128, 8
    $region9: #{tpu_custom_call.1} parent=1 // pred_fallthru
      _
    // Predicated region
    $region10: #{tpu_custom_call.1} parent=1 // pred_check
      _
    $region11: #{tpu_custom_call.1} parent=1 // pred_check_branch
      %35 = sbr.rel (0) target = $region13
    $region12: #{tpu_custom_call.1} parent=1 // pred_region
      %36 = dma.done [#allocation3], 256
    $region13: #{tpu_custom_call.1} parent=1 // pred_fallthru
      _
    // Predicated region
    $region14: #{tpu_custom_call.1} parent=1 // pred_check
      _
    $region15: #{tpu_custom_call.1} parent=1 // pred_check_branch
      %38 = sbr.rel (0) target = $region17
    $region16: #{tpu_custom_call.1} parent=1 // pred_region
      %39 = dma.done [#allocation6], 256
    $region17: #{tpu_custom_call.1} parent=1 // pred_fallthru
      _
    %v40 = vld [vmem:[#allocation2] sm:$0xff]
    %v41 = vld [vmem:[#allocation2 + $0x8] sm:$0xff]
    %v42 = vld [vmem:[#allocation5] sm:$0xff]
    %v43 = vld [vmem:[#allocation5 + $0x8] sm:$0xff]
    %v44 = vand.u32 %v40, %v42
    %v45 = vand.u32 %v41, %v43
    %46 = vst [vmem:[#allocation7] sm:$0xff] %v44
    %47 = vst [vmem:[#allocation7 + $0x8] sm:$0xff] %v45
    // Predicated region
    $region18: #{tpu_custom_call.1} parent=1 // pred_check
      _
    $region19: #{tpu_custom_call.1} parent=1 // pred_check_branch
      %49 = sbr.rel (0) target = $region21
    $region20: #{tpu_custom_call.1} parent=1 // pred_region
      %s51 = ssub.s32 256, 256
      %52 = vsyncadd [#allocation4], %s51
      %s53 = sshll.u32 [#allocation7], 4
      %s54 = int_to_ptr.vmem [resolvable:$true] %s53
      %59 = dma.vmem_to_hbm [thread:$0]  %s54, 256, %s2, [#allocation4], 128, 128, 8
    $region21: #{tpu_custom_call.1} parent=1 // pred_fallthru
      _
    // Predicated region
    $region22: #{tpu_custom_call.1} parent=1 // pred_check
      _
    $region23: #{tpu_custom_call.1} parent=1 // pred_check_branch
      %61 = sbr.rel (0) target = $region25
    $region24: #{tpu_custom_call.1} parent=1 // pred_region
      %62 = dma.done [#allocation4], 256
    $region25: #{tpu_custom_call.1} parent=1 // pred_fallthru
      _
    %63 = vsyncpa [#allocation3], 1
    %64 = vsyncpa [#allocation6], 1
    %65 = vsyncpa [#allocation4], 1

</llo_original>
